<compile_context>
chip_gen: v5e
topology: v5e:2x2
jax: 0.10.0
libtpu: 0.0.40
codegen_flags: <defaults>
</compile_context>

<pallas_src>
from functools import partial

import jax
import jax.numpy as jnp
from jax.experimental import pallas as pl
from jax.experimental.pallas import tpu as pltpu

PAD_IDX = 1  # onmt.IO.PAD_WORD index in tgt_dict (static host-side lookup)


def _copy_generator_kernel(hidden_ref, rnn_ref, emb_ref, attn_ref, src_map_ref,
                           w_lin_ref, b_lin_ref,
                           w_h_ref, w_d_ref, w_i_ref, b_gate_ref,
                           out_ref, *, v_pad):
    hidden = hidden_ref[0]                                   # [Tt, H] f32

    # Vocab logits on the MXU in bf16 (f32 accumulate).  PAD column and the
    # V->Vp padding columns carry -inf via the bias, so they contribute exact
    # zeros to the softmax.  (Assumes hidden @ w_lin is finite; a +inf logit in
    # a -inf column would give NaN -- not reachable with finite activations.)
    logits = jnp.dot(hidden.astype(jnp.bfloat16), w_lin_ref[...],
                     preferred_element_type=jnp.float32) + b_lin_ref[...]
    m = jnp.max(logits, axis=-1, keepdims=True)
    e = jnp.exp(logits - m)                                  # pads -> exp(-inf) = 0
    denom = jnp.sum(e, axis=-1, keepdims=True)               # [Tt, 1]

    # p_gen = sigmoid(w1*hidden + w2*rnn_output + w3*src_emb): VPU multiplies +
    # row reductions (no width-1 MXU matmuls), one fused bias.
    gate = (jnp.sum(hidden * w_h_ref[...], axis=-1, keepdims=True)
            + jnp.sum(rnn_ref[0] * w_d_ref[...], axis=-1, keepdims=True)
            + jnp.sum(emb_ref[0] * w_i_ref[...], axis=-1, keepdims=True)
            + b_gate_ref[...])
    p_gen = jax.nn.sigmoid(gate)                             # [Tt, 1]

    # out_prob = softmax(logits) * (1 - p_gen): fold normalization + gate into
    # one narrow per-row scale (reciprocal on the EUP slot), then one wide
    # lane-aligned store.
    scale = (1.0 - p_gen) * pl.reciprocal(denom, approx=True)
    out_ref[0, :, :v_pad] = e * scale

    # Copy distribution: batch lives on the grid, so this is a single
    # [Tt, S] @ [S, Cp] dot against this batch's src_map panel (Cp padding
    # columns are zero -> exact-zero copy probs there).
    mul_attn = attn_ref[0] * p_gen                           # [Tt, S]
    out_ref[0, :, v_pad:] = jnp.dot(mul_attn, src_map_ref[0],
                                    preferred_element_type=jnp.float32)


def _round_up(x, m):
    return ((x + m - 1) // m) * m


def _choose_tile_t(t_len, target=512):
    """Row tile over the time axis.  Full-T block if it fits the target,
    otherwise an MXU-friendly 256-multiple (<= target); the tail block is
    masked so T need not divide the tile."""
    if t_len <= target:
        return t_len
    if target >= 256:
        return (target // 256) * 256
    return max((target // 8) * 8, 8)


def _default_vmem_limit():
    # ~75% of physical VMEM: ~96 MiB on v5e/v6e (128 MiB), ~48 MiB on v7x (64 MiB).
    try:
        cap = pltpu.get_tpu_info().vmem_capacity_bytes
    except Exception:
        cap = 64 * 1024 * 1024
    return min(100 * 1024 * 1024, int(cap) * 3 // 4)


def copy_generator_forward(hidden, attn, src_map, rnn_output, src_emb, params,
                           *, pad_idx=PAD_IDX, tile_t=None, tile_target=512,
                           return_padded=False):
    N, H = hidden.shape
    n2, S = attn.shape
    S2, B, C = src_map.shape
    assert N == n2 and S == S2 and N % B == 0
    E = src_emb.shape[1]
    V = params["w_lin"].shape[1]
    T = N // B

    Vp = _round_up(V, 128)
    Cp = _round_up(C, 128)

    if tile_t is None:
        tile_t = _choose_tile_t(T, tile_target)
    assert tile_t == T or (tile_t > 0 and tile_t % 8 == 0), \
        "tile_t must equal T or be a multiple of 8 (sublane alignment)"
    grid = (B, pl.cdiv(T, tile_t))

    # --- One-time parameter / layout prep (tiny, wrapper side) -------------
    #  * w_lin cast to bf16, padded to Vp columns of zeros.
    #  * PAD + padding columns baked into the (f32) vocab bias as -inf.
    #  * gate weights as row vectors + one fused gate bias.
    #  * activations presented batch-major [B, T, feat]; src_map as [B, S, Cp].
    w_lin_p = jnp.zeros((H, Vp), jnp.bfloat16)
    w_lin_p = w_lin_p.at[:, :V].set(params["w_lin"].astype(jnp.bfloat16))
    b_lin_p = jnp.full((1, Vp), -jnp.inf, jnp.float32)
    b_lin_p = b_lin_p.at[0, :V].set(params["b_lin"].reshape(V))
    b_lin_p = b_lin_p.at[0, pad_idx].set(-jnp.inf)

    w_h = params["w_h"].reshape(1, H)
    w_d = params["w_d"].reshape(1, H)
    w_i = params["w_i"].reshape(1, E)
    b_gate = (params["b_h"] + params["b_d"] + params["b_i"]).reshape(1, 1)

    def to_bm(x):  # [T*B, F] time-major -> [B, T, F] batch-major
        return jnp.transpose(x.reshape(T, B, x.shape[-1]), (1, 0, 2))

    hidden_bm = to_bm(hidden)
    rnn_bm = to_bm(rnn_output)
    emb_bm = to_bm(src_emb)
    attn_bm = to_bm(attn)
    sm_bm = jnp.zeros((B, S, Cp), src_map.dtype)
    sm_bm = sm_bm.at[:, :, :C].set(jnp.transpose(src_map, (1, 0, 2)))

    def act_spec(feat):
        return pl.BlockSpec((1, tile_t, feat), lambda b, i: (b, i, 0))

    def const_spec(shape):
        zeros = (0,) * len(shape)
        return pl.BlockSpec(shape, lambda b, i: zeros)

    kernel = partial(_copy_generator_kernel, v_pad=Vp)

    out_bm = pl.pallas_call(
        kernel,
        out_shape=jax.ShapeDtypeStruct((B, T, Vp + Cp), jnp.float32),
        grid=grid,
        in_specs=[act_spec(H), act_spec(H), act_spec(E), act_spec(S),
                  pl.BlockSpec((1, S, Cp), lambda b, i: (b, 0, 0)),
                  const_spec((H, Vp)), const_spec((1, Vp)),
                  const_spec((1, H)), const_spec((1, H)), const_spec((1, E)),
                  const_spec((1, 1))],
        out_specs=pl.BlockSpec((1, tile_t, Vp + Cp), lambda b, i: (b, i, 0)),
        compiler_params=pltpu.CompilerParams(
            dimension_semantics=("parallel", "parallel"),
            vmem_limit_bytes=_default_vmem_limit()),
    )(hidden_bm, rnn_bm, emb_bm, attn_bm, sm_bm,
      w_lin_p, b_lin_p, w_h, w_d, w_i, b_gate)

    if return_padded:
        # Production consumers can read the lane-padded batch-major layout
        # directly (vocab at [:, :, :Vp], copy at [:, :, Vp:Vp+C]) and skip the
        # reshuffle below.
        return out_bm

    # Reassemble the module's exact [T*B, V + C] time-major layout.
    out = jnp.concatenate([out_bm[:, :, :V], out_bm[:, :, Vp:Vp + C]], axis=-1)
    return jnp.transpose(out, (1, 0, 2)).reshape(N, V + C)


def reference_forward(hidden, attn, src_map, rnn_output, src_emb, params,
                      pad_idx=PAD_IDX):
    """Pure-JAX f32 reference matching the PyTorch semantics."""
    logits = hidden @ params["w_lin"] + params["b_lin"]
    logits = logits.at[:, pad_idx].set(-jnp.inf)
    prob = jax.nn.softmax(logits, axis=-1)
    copy = jax.nn.sigmoid(hidden @ params["w_h"] + params["b_h"]
                          + rnn_output @ params["w_d"] + params["b_d"]
                          + src_emb @ params["w_i"] + params["b_i"])
    out_prob = prob * (1.0 - copy)
    mul_attn = attn * copy
    S, B, C = src_map.shape
    T = hidden.shape[0] // B
    cp = jnp.einsum("tbs,sbc->tbc", mul_attn.reshape(T, B, S), src_map)
    return jnp.concatenate([out_prob, cp.reshape(T * B, C)], axis=1)


def _init_linear(key, fan_in, fan_out):
    """Deterministic init mimicking nn.Linear default (uniform +-1/sqrt(fan_in))."""
    kw, kb = jax.random.split(key)
    bound = 1.0 / (fan_in ** 0.5)
    w = jax.random.uniform(kw, (fan_in, fan_out), jnp.float32, -bound, bound)
    b = jax.random.uniform(kb, (1, fan_out), jnp.float32, -bound, bound)
    return w, b


if __name__ == "__main__":
    # Small shapes consistent with the module's forward:
    #   rnn_size H=32, tgt_word_vec_size E=16, tlen T=12, batch B=4 -> N=48,
    #   slen S=8, len(tgt_dict) V=24, cvocab C=12.
    B, T, H, E, S, V, C = 4, 12, 32, 16, 8, 24, 12
    N = B * T

    key = jax.random.PRNGKey(0)
    keys = jax.random.split(key, 9)

    hidden = jax.random.normal(keys[0], (N, H), jnp.float32)
    rnn_output = jax.random.normal(keys[1], (N, H), jnp.float32)
    src_emb = jax.random.normal(keys[2], (N, E), jnp.float32)
    attn = jax.nn.softmax(jax.random.normal(keys[3], (N, S), jnp.float32), -1)
    src_map = jax.random.uniform(keys[4], (S, B, C), jnp.float32)

    w_lin, b_lin = _init_linear(keys[5], H, V)
    w_h, b_h = _init_linear(keys[6], H, 1)
    w_d, b_d = _init_linear(keys[7], H, 1)
    w_i, b_i = _init_linear(keys[8], E, 1)
    params = dict(w_lin=w_lin, b_lin=b_lin, w_h=w_h, b_h=b_h,
                  w_d=w_d, b_d=b_d, w_i=w_i, b_i=b_i)

    ref = reference_forward(hidden, attn, src_map, rnn_output, src_emb, params)

    # Tolerances loosened DELIBERATELY: the vocab matmul runs with bf16 MXU
    # operands (f32 accumulate) and the softmax epilogue uses the approximate
    # EUP reciprocal; the copy half stays f32 (tiny reassociation diffs only).
    ATOL, RTOL = 1e-2, 5e-2

    # Default tile choice: single full-T block per batch, grid = (B, 1).
    out = copy_generator_forward(hidden, attn, src_map, rnn_output, src_emb,
                                 params)
    out = jax.block_until_ready(out)
    assert out.shape == (N, V + C), out.shape
    assert jnp.allclose(out, ref, atol=ATOL, rtol=RTOL), "mismatch (default tile)"

    # Explicit 8-row tile -> grid (B, 2) with a masked 4-row tail block
    # (exercises the pipelined multi-step grid and the non-dividing tail path).
    out_tiled = copy_generator_forward(hidden, attn, src_map, rnn_output,
                                       src_emb, params, tile_t=8)
    out_tiled = jax.block_until_ready(out_tiled)
    assert jnp.allclose(out_tiled, ref, atol=ATOL, rtol=RTOL), "mismatch (tiled)"

    print("KERNEL_OK")
</pallas_src>

<mosaic_0001>
module attributes {stable_mosaic.version = 11 : i64} {
  func.func @_copy_generator_kernel(%arg0: i32, %arg1: i32, %arg2: memref<1x12x32xf32, #tpu.memory_space<vmem>>, %arg3: memref<1x12x32xf32, #tpu.memory_space<vmem>>, %arg4: memref<1x12x16xf32, #tpu.memory_space<vmem>>, %arg5: memref<1x12x8xf32, #tpu.memory_space<vmem>>, %arg6: memref<1x8x128xf32, #tpu.memory_space<vmem>>, %arg7: memref<32x128xbf16, #tpu.memory_space<vmem>>, %arg8: memref<1x128xf32, #tpu.memory_space<vmem>>, %arg9: memref<1x32xf32, #tpu.memory_space<vmem>>, %arg10: memref<1x32xf32, #tpu.memory_space<vmem>>, %arg11: memref<1x16xf32, #tpu.memory_space<vmem>>, %arg12: memref<1x1xf32, #tpu.memory_space<vmem>>, %arg13: memref<1x12x256xf32, #tpu.memory_space<vmem>>) attributes {dimension_semantics = [#tpu.dimension_semantics<parallel>, #tpu.dimension_semantics<parallel>], iteration_bounds = array<i64: 4, 1>, scalar_prefetch = 0 : i64, scratch_operands = 0 : i64, tpu.core_type = #tpu.core_type<tc>, window_params = [{transform_indices = @transform_0, window_bounds = array<i64: 1, 12, 32>}, {transform_indices = @transform_1, window_bounds = array<i64: 1, 12, 32>}, {transform_indices = @transform_2, window_bounds = array<i64: 1, 12, 16>}, {transform_indices = @transform_3, window_bounds = array<i64: 1, 12, 8>}, {transform_indices = @transform_4, window_bounds = array<i64: 1, 8, 128>}, {pipeline_mode = #tpu.pipeline_mode<synchronous>, transform_indices = @transform_5, window_bounds = array<i64: 32, 128>}, {pipeline_mode = #tpu.pipeline_mode<synchronous>, transform_indices = @transform_6, window_bounds = array<i64: 1, 128>}, {pipeline_mode = #tpu.pipeline_mode<synchronous>, transform_indices = @transform_7, window_bounds = array<i64: 1, 32>}, {pipeline_mode = #tpu.pipeline_mode<synchronous>, transform_indices = @transform_8, window_bounds = array<i64: 1, 32>}, {pipeline_mode = #tpu.pipeline_mode<synchronous>, transform_indices = @transform_9, window_bounds = array<i64: 1, 16>}, {pipeline_mode = #tpu.pipeline_mode<synchronous>, transform_indices = @transform_10, window_bounds = array<i64: 1, 1>}, {transform_indices = @transform_11, window_bounds = array<i64: 1, 12, 256>}]} {
    %c0 = arith.constant 0 : index
    %c0_0 = arith.constant 0 : index
    %c0_1 = arith.constant 0 : index
    %0 = vector.load %arg2[%c0, %c0_0, %c0_1] : memref<1x12x32xf32, #tpu.memory_space<vmem>>, vector<1x12x32xf32>
    %1 = vector.shape_cast %0 : vector<1x12x32xf32> to vector<12x32xf32>
    %2 = arith.truncf %1 : vector<12x32xf32> to vector<12x32xbf16>
    %c0_2 = arith.constant 0 : index
    %c0_3 = arith.constant 0 : index
    %3 = vector.load %arg7[%c0_2, %c0_3] : memref<32x128xbf16, #tpu.memory_space<vmem>>, vector<32x128xbf16>
    %cst = arith.constant dense<0.000000e+00> : vector<12x128xf32>
    %4 = tpu.matmul %2, %3, %cst {dimension_numbers = #tpu.dot_dimension_numbers<[1], [0], [0], [1], [0, 0, 1, 1], [], []>} : vector<12x32xbf16>, vector<32x128xbf16>, vector<12x128xf32> -> vector<12x128xf32>
    %c0_4 = arith.constant 0 : index
    %c0_5 = arith.constant 0 : index
    %5 = vector.load %arg8[%c0_4, %c0_5] : memref<1x128xf32, #tpu.memory_space<vmem>>, vector<1x128xf32>
    %6 = vector.broadcast %5 : vector<1x128xf32> to vector<12x128xf32>
    %7 = arith.addf %4, %6 : vector<12x128xf32>
    %cst_6 = arith.constant dense<0xFF800000> : vector<12xf32>
    %8 = vector.multi_reduction <maximumf>, %7, %cst_6 [1] : vector<12x128xf32> to vector<12xf32>
    %9 = vector.shape_cast %8 : vector<12xf32> to vector<12x1xf32>
    %10 = vector.broadcast %9 : vector<12x1xf32> to vector<12x128xf32>
    %11 = arith.subf %7, %10 : vector<12x128xf32>
    %12 = math.exp %11 : vector<12x128xf32>
    %cst_7 = arith.constant dense<0.000000e+00> : vector<12xf32>
    %13 = vector.multi_reduction <add>, %12, %cst_7 [1] : vector<12x128xf32> to vector<12xf32>
    %14 = vector.shape_cast %13 : vector<12xf32> to vector<12x1xf32>
    %c0_8 = arith.constant 0 : index
    %c0_9 = arith.constant 0 : index
    %15 = vector.load %arg9[%c0_8, %c0_9] : memref<1x32xf32, #tpu.memory_space<vmem>>, vector<1x32xf32>
    %16 = vector.broadcast %15 : vector<1x32xf32> to vector<12x32xf32>
    %17 = arith.mulf %1, %16 : vector<12x32xf32>
    %cst_10 = arith.constant dense<0.000000e+00> : vector<12xf32>
    %18 = vector.multi_reduction <add>, %17, %cst_10 [1] : vector<12x32xf32> to vector<12xf32>
    %19 = vector.shape_cast %18 : vector<12xf32> to vector<12x1xf32>
    %c0_11 = arith.constant 0 : index
    %c0_12 = arith.constant 0 : index
    %c0_13 = arith.constant 0 : index
    %20 = vector.load %arg3[%c0_11, %c0_12, %c0_13] : memref<1x12x32xf32, #tpu.memory_space<vmem>>, vector<1x12x32xf32>
    %21 = vector.shape_cast %20 : vector<1x12x32xf32> to vector<12x32xf32>
    %c0_14 = arith.constant 0 : index
    %c0_15 = arith.constant 0 : index
    %22 = vector.load %arg10[%c0_14, %c0_15] : memref<1x32xf32, #tpu.memory_space<vmem>>, vector<1x32xf32>
    %23 = vector.broadcast %22 : vector<1x32xf32> to vector<12x32xf32>
    %24 = arith.mulf %21, %23 : vector<12x32xf32>
    %cst_16 = arith.constant dense<0.000000e+00> : vector<12xf32>
    %25 = vector.multi_reduction <add>, %24, %cst_16 [1] : vector<12x32xf32> to vector<12xf32>
    %26 = vector.shape_cast %25 : vector<12xf32> to vector<12x1xf32>
    %27 = arith.addf %19, %26 : vector<12x1xf32>
    %c0_17 = arith.constant 0 : index
    %c0_18 = arith.constant 0 : index
    %c0_19 = arith.constant 0 : index
    %28 = vector.load %arg4[%c0_17, %c0_18, %c0_19] : memref<1x12x16xf32, #tpu.memory_space<vmem>>, vector<1x12x16xf32>
    %29 = vector.shape_cast %28 : vector<1x12x16xf32> to vector<12x16xf32>
    %c0_20 = arith.constant 0 : index
    %c0_21 = arith.constant 0 : index
    %30 = vector.load %arg11[%c0_20, %c0_21] : memref<1x16xf32, #tpu.memory_space<vmem>>, vector<1x16xf32>
    %31 = vector.broadcast %30 : vector<1x16xf32> to vector<12x16xf32>
    %32 = arith.mulf %29, %31 : vector<12x16xf32>
    %cst_22 = arith.constant dense<0.000000e+00> : vector<12xf32>
    %33 = vector.multi_reduction <add>, %32, %cst_22 [1] : vector<12x16xf32> to vector<12xf32>
    %34 = vector.shape_cast %33 : vector<12xf32> to vector<12x1xf32>
    %35 = arith.addf %27, %34 : vector<12x1xf32>
    %c0_23 = arith.constant 0 : index
    %c0_24 = arith.constant 0 : index
    %36 = vector.load %arg12[%c0_23, %c0_24] : memref<1x1xf32, #tpu.memory_space<vmem>>, vector<1x1xf32>
    %37 = vector.broadcast %36 : vector<1x1xf32> to vector<12x1xf32>
    %38 = arith.addf %35, %37 : vector<12x1xf32>
    %39 = arith.negf %38 : vector<12x1xf32>
    %40 = math.exp %39 : vector<12x1xf32>
    %cst_25 = arith.constant 1.000000e+00 : f32
    %41 = vector.broadcast %cst_25 : f32 to vector<12x1xf32>
    %42 = arith.addf %41, %40 : vector<12x1xf32>
    %43 = arith.divf %41, %42 : vector<12x1xf32>
    %cst_26 = arith.constant 1.000000e+00 : f32
    %44 = vector.broadcast %cst_26 : f32 to vector<12x1xf32>
    %45 = arith.subf %44, %43 : vector<12x1xf32>
    %46 = tpu.reciprocal %14 {approx = true} : vector<12x1xf32> -> vector<12x1xf32>
    %47 = arith.mulf %45, %46 : vector<12x1xf32>
    %48 = vector.broadcast %47 : vector<12x1xf32> to vector<12x128xf32>
    %49 = arith.mulf %12, %48 : vector<12x128xf32>
    %c0_27 = arith.constant 0 : index
    %c0_28 = arith.constant 0 : index
    %c0_29 = arith.constant 0 : index
    %50 = vector.load %arg13[%c0_27, %c0_28, %c0_29] : memref<1x12x256xf32, #tpu.memory_space<vmem>>, vector<1x12x128xf32>
    %51 = vector.shape_cast %50 : vector<1x12x128xf32> to vector<12x128xf32>
    %52 = vector.shape_cast %49 : vector<12x128xf32> to vector<1x12x128xf32>
    tpu.vector_store %arg13[%c0_27, %c0_28, %c0_29], %52 {strides = array<i32>} : memref<1x12x256xf32, #tpu.memory_space<vmem>>, vector<1x12x128xf32>,
    %c0_30 = arith.constant 0 : index
    %c0_31 = arith.constant 0 : index
    %c0_32 = arith.constant 0 : index
    %53 = vector.load %arg5[%c0_30, %c0_31, %c0_32] : memref<1x12x8xf32, #tpu.memory_space<vmem>>, vector<1x12x8xf32>
    %54 = vector.shape_cast %53 : vector<1x12x8xf32> to vector<12x8xf32>
    %55 = vector.broadcast %43 : vector<12x1xf32> to vector<12x8xf32>
    %56 = arith.mulf %54, %55 : vector<12x8xf32>
    %c0_33 = arith.constant 0 : index
    %c0_34 = arith.constant 0 : index
    %c0_35 = arith.constant 0 : index
    %57 = vector.load %arg6[%c0_33, %c0_34, %c0_35] : memref<1x8x128xf32, #tpu.memory_space<vmem>>, vector<1x8x128xf32>
    %58 = vector.shape_cast %57 : vector<1x8x128xf32> to vector<8x128xf32>
    %cst_36 = arith.constant dense<0.000000e+00> : vector<12x128xf32>
    %59 = tpu.matmul %56, %58, %cst_36 {dimension_numbers = #tpu.dot_dimension_numbers<[1], [0], [0], [1], [0, 0, 1, 1], [], []>} : vector<12x8xf32>, vector<8x128xf32>, vector<12x128xf32> -> vector<12x128xf32>
    %c0_37 = arith.constant 0 : index
    %c0_38 = arith.constant 0 : index
    %c128 = arith.constant 128 : index
    %60 = vector.load %arg13[%c0_37, %c0_38, %c128] : memref<1x12x256xf32, #tpu.memory_space<vmem>>, vector<1x12x128xf32>
    %61 = vector.shape_cast %60 : vector<1x12x128xf32> to vector<12x128xf32>
    %62 = vector.shape_cast %59 : vector<12x128xf32> to vector<1x12x128xf32>
    tpu.vector_store %arg13[%c0_37, %c0_38, %c128], %62 {strides = array<i32>} : memref<1x12x256xf32, #tpu.memory_space<vmem>>, vector<1x12x128xf32>,
    return
  }
  func.func @transform_0(%arg0: i32, %arg1: i32) -> (i32, i32, i32) {
    %c0_i32 = arith.constant 0 : i32
    %c0_i32_0 = arith.constant 0 : i32
    return %arg0, %arg1, %c0_i32 : i32, i32, i32
  }
  func.func @transform_1(%arg0: i32, %arg1: i32) -> (i32, i32, i32) {
    %c0_i32 = arith.constant 0 : i32
    %c0_i32_0 = arith.constant 0 : i32
    return %arg0, %arg1, %c0_i32 : i32, i32, i32
  }
  func.func @transform_2(%arg0: i32, %arg1: i32) -> (i32, i32, i32) {
    %c0_i32 = arith.constant 0 : i32
    %c0_i32_0 = arith.constant 0 : i32
    return %arg0, %arg1, %c0_i32 : i32, i32, i32
  }
  func.func @transform_3(%arg0: i32, %arg1: i32) -> (i32, i32, i32) {
    %c0_i32 = arith.constant 0 : i32
    %c0_i32_0 = arith.constant 0 : i32
    return %arg0, %arg1, %c0_i32 : i32, i32, i32
  }
  func.func @transform_4(%arg0: i32, %arg1: i32) -> (i32, i32, i32) {
    %c0_i32 = arith.constant 0 : i32
    %c0_i32_0 = arith.constant 0 : i32
    %c0_i32_1 = arith.constant 0 : i32
    return %arg0, %c0_i32, %c0_i32_0 : i32, i32, i32
  }
  func.func @transform_5(%arg0: i32, %arg1: i32) -> (i32, i32) {
    %c0_i32 = arith.constant 0 : i32
    %c0_i32_0 = arith.constant 0 : i32
    %c0_i32_1 = arith.constant 0 : i32
    return %c0_i32, %c0_i32_0 : i32, i32
  }
  func.func @transform_6(%arg0: i32, %arg1: i32) -> (i32, i32) {
    %c0_i32 = arith.constant 0 : i32
    %c0_i32_0 = arith.constant 0 : i32
    %c0_i32_1 = arith.constant 0 : i32
    return %c0_i32, %c0_i32_0 : i32, i32
  }
  func.func @transform_7(%arg0: i32, %arg1: i32) -> (i32, i32) {
    %c0_i32 = arith.constant 0 : i32
    %c0_i32_0 = arith.constant 0 : i32
    %c0_i32_1 = arith.constant 0 : i32
    return %c0_i32, %c0_i32_0 : i32, i32
  }
  func.func @transform_8(%arg0: i32, %arg1: i32) -> (i32, i32) {
    %c0_i32 = arith.constant 0 : i32
    %c0_i32_0 = arith.constant 0 : i32
    %c0_i32_1 = arith.constant 0 : i32
    return %c0_i32, %c0_i32_0 : i32, i32
  }
  func.func @transform_9(%arg0: i32, %arg1: i32) -> (i32, i32) {
    %c0_i32 = arith.constant 0 : i32
    %c0_i32_0 = arith.constant 0 : i32
    %c0_i32_1 = arith.constant 0 : i32
    return %c0_i32, %c0_i32_0 : i32, i32
  }
  func.func @transform_10(%arg0: i32, %arg1: i32) -> (i32, i32) {
    %c0_i32 = arith.constant 0 : i32
    %c0_i32_0 = arith.constant 0 : i32
    %c0_i32_1 = arith.constant 0 : i32
    return %c0_i32, %c0_i32_0 : i32, i32
  }
  func.func @transform_11(%arg0: i32, %arg1: i32) -> (i32, i32, i32) {
    %c0_i32 = arith.constant 0 : i32
    %c0_i32_0 = arith.constant 0 : i32
    return %arg0, %arg1, %c0_i32 : i32, i32, i32
  }
}

</mosaic_0001>

<llo_original>
// kernel: tpu_custom_call.1
$region0: #{tpu_custom_call.1}
  #allocation0 [shape = 'u32[]', space=smem, size = 0x4, offset = 0x4, fixed_abs, tag = 'smem constant byte address 0x4 - core index']
  #allocation1 [shape = 'u32[72,128]{1,0:T(1,128)}', space=vmem, size = 0x9000, scoped, tag = 'internal scratch']
  #allocation2 [shape = 'f32[1,1]{1,0:T(1,128)S(1)}', space=vmem, size = 0x200, scoped, tag = 'scoped memory for tpu_custom_call.1']
  %s0 = inlined_call_operand.vmem [shape: f32[4,12,32], index: 0, kind: input, shape index: {}]
  %s1 = inlined_call_operand.vmem [shape: f32[4,12,32], index: 1, kind: input, shape index: {}]
  %s2 = inlined_call_operand.vmem [shape: f32[4,12,16], index: 2, kind: input, shape index: {}]
  %s3 = inlined_call_operand.vmem [shape: f32[4,12,8], index: 3, kind: input, shape index: {}]
  %s4 = inlined_call_operand.vmem [shape: f32[4,8,128], index: 4, kind: input, shape index: {}]
  %s5 = inlined_call_operand.vmem [shape: bf16[32,128], index: 5, kind: input, shape index: {}]
  %s6 = inlined_call_operand.vmem [shape: f32[1,128], index: 6, kind: input, shape index: {}]
  %s7 = inlined_call_operand.vmem [shape: f32[1,32], index: 7, kind: input, shape index: {}]
  %s8 = inlined_call_operand.vmem [shape: f32[1,32], index: 8, kind: input, shape index: {}]
  %s9 = inlined_call_operand.vmem [shape: f32[1,16], index: 9, kind: input, shape index: {}]
  %s10 = inlined_call_operand.<no memory space> [shape: f32[1,1], index: 10, kind: input, shape index: {}]
  %s11 = inlined_call_operand.vmem [shape: f32[4,12,256], index: 11, kind: output, shape index: {}]
  %s12 = sld [smem:[#allocation0]]
  $region77: #{tpu_custom_call.1} parent=0
    _
  %s14 = ssub.s32 1, %s12
  %s15 = scalar_select 0, %s14, %s12
  %v16 = vstv %s10
  %17 = vst [vmem:[#allocation2] sm:$0x1] %v16
  loop: start=0, step=1, limit=6
  $region2: #{tpu_custom_call.1} parent=0 // loop_pre_header
    _
  $region3: #{tpu_custom_call.1} parent=0 // loop_header
    %s19 = sphi 0, %s23
    %p20 = scmp.ge.s32.totalorder %s19, 6
    %s26 = sphi 0, %s38
    %s27 = sphi 0, %s34
    %s28 = sphi 0, %s26
    %s29 = sphi 0, %s27
    %s30 = sphi 0, %s28
    %s31 = sphi 0, %s29
    %s43 = sphi 0, %s45
    %s46 = sphi 0, %s43
    %s47 = sphi 0, %s46
    %s63 = sphi 0, %s47
    %s71 = sphi 0, %s73
    %s74 = sphi 0, %s71
    %s75 = sphi 0, %s74
    %s91 = sphi 0, %s75
    %s99 = sphi 0, %s101
    %s102 = sphi 0, %s99
    %s103 = sphi 0, %s102
    %s119 = sphi 0, %s103
    %s127 = sphi 0, %s129
    %s130 = sphi 0, %s127
    %s131 = sphi 0, %s130
    %s147 = sphi 0, %s131
    %s153 = sphi 0, %s155
    %s156 = sphi 0, %s153
    %s157 = sphi 0, %s156
    %s173 = sphi 0, %s157
    %s177 = sphi 0, %s177
    %s179 = sphi 0, %s177
    %s180 = sphi 0, %s179
    %s194 = sphi 0, %s180
    %s198 = sphi 0, %s198
    %s200 = sphi 0, %s198
    %s201 = sphi 0, %s200
    %s215 = sphi 0, %s201
    %s219 = sphi 0, %s219
    %s221 = sphi 0, %s219
    %s222 = sphi 0, %s221
    %s236 = sphi 0, %s222
    %s240 = sphi 0, %s240
    %s242 = sphi 0, %s240
    %s243 = sphi 0, %s242
    %s257 = sphi 0, %s243
    %s261 = sphi 0, %s261
    %s263 = sphi 0, %s261
    %s264 = sphi 0, %s263
    %s278 = sphi 0, %s264
    %s282 = sphi 0, %s282
    %s284 = sphi 0, %s282
    %s285 = sphi 0, %s284
    %s299 = sphi 0, %s285
    %s307 = sphi 0, %s309
    %s310 = sphi 0, %s307
    %s311 = sphi 0, %s310
    %s327 = sphi 0, %s311
  $region4: #{tpu_custom_call.1} parent=0 // loop_header_branch
    %22 = sbr.rel (%p20) target = $region8
  $region5: #{tpu_custom_call.1} parent=0 // loop_body
    %s24 = ssub.s32 %s19, 1
    %s25 = ssub.s32 %s19, 2
    %s32 = sadd.s32 1, %s27
    %p33 = scmp.ge.s32.totalorder %s32, 1
    %s34 = scalar_select %p33, 0, %s32
    %s35 = sadd.s32 1, %s26
    %s36 = scalar_select %p33, %s35, %s26
    %p37 = scmp.ge.s32.totalorder %s36, 4
    %s38 = scalar_select %p37, 0, %s36
    %s39 = ssub.s32 %s26, %s38
    %s40 = ssub.s32 %s27, %s34
    %s41 = sor.u32 %s39, %s40
    %p42 = scmp.eq.s32.totalorder %s41, 0
    %s44 = sadd.s32 %s43, 1
    %s45 = scalar_select %p42, %s43, %s44
    %p48 = pneg %p42
    %p49 = scmp.eq.s32.totalorder %s19, 3
    %p50 = por %p48, %p49
    %p51 = scmp.ne.s32.totalorder %s43, %s46
    %p52 = scmp.eq.s32.totalorder %s19, 0
    %p53 = por %p51, %p52
    %p54 = scmp.ne.s32.totalorder %s43, %s46
    %p55 = scmp.eq.s32.totalorder %s24, 3
    %p56 = por %p54, %p55
    %p57 = scmp.ne.s32.totalorder %s46, %s47
    %p58 = scmp.eq.s32.totalorder %s24, 0
    %p59 = por %p57, %p58
    %p60 = scmp.ne.s32.totalorder %s46, %s47
    %p61 = scmp.eq.s32.totalorder %s25, 3
    %p62 = por %p60, %p61
    %p64 = scmp.ne.s32.totalorder %s47, %s63
    %p65 = scmp.eq.s32.totalorder %s25, 0
    %p66 = por %p64, %p65
    %s67 = ssub.s32 %s26, %s38
    %s68 = ssub.s32 %s27, %s34
    %s69 = sor.u32 %s67, %s68
    %p70 = scmp.eq.s32.totalorder %s69, 0
    %s72 = sadd.s32 %s71, 1
    %s73 = scalar_select %p70, %s71, %s72
    %p76 = pneg %p70
    %p77 = scmp.eq.s32.totalorder %s19, 3
    %p78 = por %p76, %p77
    %p79 = scmp.ne.s32.totalorder %s71, %s74
    %p80 = scmp.eq.s32.totalorder %s19, 0
    %p81 = por %p79, %p80
    %p82 = scmp.ne.s32.totalorder %s71, %s74
    %p83 = scmp.eq.s32.totalorder %s24, 3
    %p84 = por %p82, %p83
    %p85 = scmp.ne.s32.totalorder %s74, %s75
    %p86 = scmp.eq.s32.totalorder %s24, 0
    %p87 = por %p85, %p86
    %p88 = scmp.ne.s32.totalorder %s74, %s75
    %p89 = scmp.eq.s32.totalorder %s25, 3
    %p90 = por %p88, %p89
    %p92 = scmp.ne.s32.totalorder %s75, %s91
    %p93 = scmp.eq.s32.totalorder %s25, 0
    %p94 = por %p92, %p93
    %s95 = ssub.s32 %s26, %s38
    %s96 = ssub.s32 %s27, %s34
    %s97 = sor.u32 %s95, %s96
    %p98 = scmp.eq.s32.totalorder %s97, 0
    %s100 = sadd.s32 %s99, 1
    %s101 = scalar_select %p98, %s99, %s100
    %p104 = pneg %p98
    %p105 = scmp.eq.s32.totalorder %s19, 3
    %p106 = por %p104, %p105
    %p107 = scmp.ne.s32.totalorder %s99, %s102
    %p108 = scmp.eq.s32.totalorder %s19, 0
    %p109 = por %p107, %p108
    %p110 = scmp.ne.s32.totalorder %s99, %s102
    %p111 = scmp.eq.s32.totalorder %s24, 3
    %p112 = por %p110, %p111
    %p113 = scmp.ne.s32.totalorder %s102, %s103
    %p114 = scmp.eq.s32.totalorder %s24, 0
    %p115 = por %p113, %p114
    %p116 = scmp.ne.s32.totalorder %s102, %s103
    %p117 = scmp.eq.s32.totalorder %s25, 3
    %p118 = por %p116, %p117
    %p120 = scmp.ne.s32.totalorder %s103, %s119
    %p121 = scmp.eq.s32.totalorder %s25, 0
    %p122 = por %p120, %p121
    %s123 = ssub.s32 %s26, %s38
    %s124 = ssub.s32 %s27, %s34
    %s125 = sor.u32 %s123, %s124
    %p126 = scmp.eq.s32.totalorder %s125, 0
    %s128 = sadd.s32 %s127, 1
    %s129 = scalar_select %p126, %s127, %s128
    %p132 = pneg %p126
    %p133 = scmp.eq.s32.totalorder %s19, 3
    %p134 = por %p132, %p133
    %p135 = scmp.ne.s32.totalorder %s127, %s130
    %p136 = scmp.eq.s32.totalorder %s19, 0
    %p137 = por %p135, %p136
    %p138 = scmp.ne.s32.totalorder %s127, %s130
    %p139 = scmp.eq.s32.totalorder %s24, 3
    %p140 = por %p138, %p139
    %p141 = scmp.ne.s32.totalorder %s130, %s131
    %p142 = scmp.eq.s32.totalorder %s24, 0
    %p143 = por %p141, %p142
    %p144 = scmp.ne.s32.totalorder %s130, %s131
    %p145 = scmp.eq.s32.totalorder %s25, 3
    %p146 = por %p144, %p145
    %p148 = scmp.ne.s32.totalorder %s131, %s147
    %p149 = scmp.eq.s32.totalorder %s25, 0
    %p150 = por %p148, %p149
    %s151 = ssub.s32 %s26, %s38
    %p152 = scmp.eq.s32.totalorder %s151, 0
    %s154 = sadd.s32 %s153, 1
    %s155 = scalar_select %p152, %s153, %s154
    %p158 = pneg %p152
    %p159 = scmp.eq.s32.totalorder %s19, 3
    %p160 = por %p158, %p159
    %p161 = scmp.ne.s32.totalorder %s153, %s156
    %p162 = scmp.eq.s32.totalorder %s19, 0
    %p163 = por %p161, %p162
    %p164 = scmp.ne.s32.totalorder %s153, %s156
    %p165 = scmp.eq.s32.totalorder %s24, 3
    %p166 = por %p164, %p165
    %p167 = scmp.ne.s32.totalorder %s156, %s157
    %p168 = scmp.eq.s32.totalorder %s24, 0
    %p169 = por %p167, %p168
    %p170 = scmp.ne.s32.totalorder %s156, %s157
    %p171 = scmp.eq.s32.totalorder %s25, 3
    %p172 = por %p170, %p171
    %p174 = scmp.ne.s32.totalorder %s157, %s173
    %p175 = scmp.eq.s32.totalorder %s25, 0
    %p176 = por %p174, %p175
    %s178 = sadd.s32 %s177, 1
    %p181 = scmp.eq.s32.totalorder %s19, 3
    %p182 = scmp.ne.s32.totalorder %s177, %s179
    %p183 = scmp.eq.s32.totalorder %s19, 0
    %p184 = por %p182, %p183
    %p185 = scmp.ne.s32.totalorder %s177, %s179
    %p186 = scmp.eq.s32.totalorder %s24, 3
    %p187 = por %p185, %p186
    %p188 = scmp.ne.s32.totalorder %s179, %s180
    %p189 = scmp.eq.s32.totalorder %s24, 0
    %p190 = por %p188, %p189
    %p191 = scmp.ne.s32.totalorder %s179, %s180
    %p192 = scmp.eq.s32.totalorder %s25, 3
    %p193 = por %p191, %p192
    %p195 = scmp.ne.s32.totalorder %s180, %s194
    %p196 = scmp.eq.s32.totalorder %s25, 0
    %p197 = por %p195, %p196
    %s199 = sadd.s32 %s198, 1
    %p202 = scmp.eq.s32.totalorder %s19, 3
    %p203 = scmp.ne.s32.totalorder %s198, %s200
    %p204 = scmp.eq.s32.totalorder %s19, 0
    %p205 = por %p203, %p204
    %p206 = scmp.ne.s32.totalorder %s198, %s200
    %p207 = scmp.eq.s32.totalorder %s24, 3
    %p208 = por %p206, %p207
    %p209 = scmp.ne.s32.totalorder %s200, %s201
    %p210 = scmp.eq.s32.totalorder %s24, 0
    %p211 = por %p209, %p210
    %p212 = scmp.ne.s32.totalorder %s200, %s201
    %p213 = scmp.eq.s32.totalorder %s25, 3
    %p214 = por %p212, %p213
    %p216 = scmp.ne.s32.totalorder %s201, %s215
    %p217 = scmp.eq.s32.totalorder %s25, 0
    %p218 = por %p216, %p217
    %s220 = sadd.s32 %s219, 1
    %p223 = scmp.eq.s32.totalorder %s19, 3
    %p224 = scmp.ne.s32.totalorder %s219, %s221
    %p225 = scmp.eq.s32.totalorder %s19, 0
    %p226 = por %p224, %p225
    %p227 = scmp.ne.s32.totalorder %s219, %s221
    %p228 = scmp.eq.s32.totalorder %s24, 3
    %p229 = por %p227, %p228
    %p230 = scmp.ne.s32.totalorder %s221, %s222
    %p231 = scmp.eq.s32.totalorder %s24, 0
    %p232 = por %p230, %p231
    %p233 = scmp.ne.s32.totalorder %s221, %s222
    %p234 = scmp.eq.s32.totalorder %s25, 3
    %p235 = por %p233, %p234
    %p237 = scmp.ne.s32.totalorder %s222, %s236
    %p238 = scmp.eq.s32.totalorder %s25, 0
    %p239 = por %p237, %p238
    %s241 = sadd.s32 %s240, 1
    %p244 = scmp.eq.s32.totalorder %s19, 3
    %p245 = scmp.ne.s32.totalorder %s240, %s242
    %p246 = scmp.eq.s32.totalorder %s19, 0
    %p247 = por %p245, %p246
    %p248 = scmp.ne.s32.totalorder %s240, %s242
    %p249 = scmp.eq.s32.totalorder %s24, 3
    %p250 = por %p248, %p249
    %p251 = scmp.ne.s32.totalorder %s242, %s243
    %p252 = scmp.eq.s32.totalorder %s24, 0
    %p253 = por %p251, %p252
    %p254 = scmp.ne.s32.totalorder %s242, %s243
    %p255 = scmp.eq.s32.totalorder %s25, 3
    %p256 = por %p254, %p255
    %p258 = scmp.ne.s32.totalorder %s243, %s257
    %p259 = scmp.eq.s32.totalorder %s25, 0
    %p260 = por %p258, %p259
    %s262 = sadd.s32 %s261, 1
    %p265 = scmp.eq.s32.totalorder %s19, 3
    %p266 = scmp.ne.s32.totalorder %s261, %s263
    %p267 = scmp.eq.s32.totalorder %s19, 0
    %p268 = por %p266, %p267
    %p269 = scmp.ne.s32.totalorder %s261, %s263
    %p270 = scmp.eq.s32.totalorder %s24, 3
    %p271 = por %p269, %p270
    %p272 = scmp.ne.s32.totalorder %s263, %s264
    %p273 = scmp.eq.s32.totalorder %s24, 0
    %p274 = por %p272, %p273
    %p275 = scmp.ne.s32.totalorder %s263, %s264
    %p276 = scmp.eq.s32.totalorder %s25, 3
    %p277 = por %p275, %p276
    %p279 = scmp.ne.s32.totalorder %s264, %s278
    %p280 = scmp.eq.s32.totalorder %s25, 0
    %p281 = por %p279, %p280
    %s283 = sadd.s32 %s282, 1
    %p286 = scmp.eq.s32.totalorder %s19, 3
    %p287 = scmp.ne.s32.totalorder %s282, %s284
    %p288 = scmp.eq.s32.totalorder %s19, 0
    %p289 = por %p287, %p288
    %p290 = scmp.ne.s32.totalorder %s282, %s284
    %p291 = scmp.eq.s32.totalorder %s24, 3
    %p292 = por %p290, %p291
    %p293 = scmp.ne.s32.totalorder %s284, %s285
    %p294 = scmp.eq.s32.totalorder %s24, 0
    %p295 = por %p293, %p294
    %p296 = scmp.ne.s32.totalorder %s284, %s285
    %p297 = scmp.eq.s32.totalorder %s25, 3
    %p298 = por %p296, %p297
    %p300 = scmp.ne.s32.totalorder %s285, %s299
    %p301 = scmp.eq.s32.totalorder %s25, 0
    %p302 = por %p300, %p301
    %s303 = ssub.s32 %s26, %s38
    %s304 = ssub.s32 %s27, %s34
    %s305 = sor.u32 %s303, %s304
    %p306 = scmp.eq.s32.totalorder %s305, 0
    %s308 = sadd.s32 %s307, 1
    %s309 = scalar_select %p306, %s307, %s308
    %p312 = pneg %p306
    %p313 = scmp.eq.s32.totalorder %s19, 3
    %p314 = por %p312, %p313
    %p315 = scmp.ne.s32.totalorder %s307, %s310
    %p316 = scmp.eq.s32.totalorder %s19, 0
    %p317 = por %p315, %p316
    %p318 = scmp.ne.s32.totalorder %s307, %s310
    %p319 = scmp.eq.s32.totalorder %s24, 3
    %p320 = por %p318, %p319
    %p321 = scmp.ne.s32.totalorder %s310, %s311
    %p322 = scmp.eq.s32.totalorder %s24, 0
    %p323 = por %p321, %p322
    %p324 = scmp.ne.s32.totalorder %s310, %s311
    %p325 = scmp.eq.s32.totalorder %s25, 3
    %p326 = por %p324, %p325
    %p328 = scmp.ne.s32.totalorder %s311, %s327
    %p329 = scmp.eq.s32.totalorder %s25, 0
    %p330 = por %p328, %p329
    %p331 = scmp.le.s32.totalorder 1, %s19
    %p332 = scmp.lt.s32.totalorder %s19, 5
    %p333 = pnand %p331, %p332
    %p334 = pneg %p333
    // Predicated region
    $region9: #{tpu_custom_call.1} parent=5 // pred_check
      _
    $region10: #{tpu_custom_call.1} parent=5 // pred_check_branch
      %336 = sbr.rel (%p333) target = $region12
    $region11: #{tpu_custom_call.1} parent=5 // pred_region
      %s337 = ssub.s32 %s19, 1
      // Predicated region
      $region13: #{tpu_custom_call.1} parent=11 // pred_check
        %p338 = pneg %p190
      $region14: #{tpu_custom_call.1} parent=11 // pred_check_branch
        %340 = sbr.rel (%p338) target = $region16
      $region15: #{tpu_custom_call.1} parent=11 // pred_region
        _
      $region16: #{tpu_custom_call.1} parent=11 // pred_fallthru
        _
      // Predicated region
      $region17: #{tpu_custom_call.1} parent=11 // pred_check
        %p341 = pneg %p211
      $region18: #{tpu_custom_call.1} parent=11 // pred_check_branch
        %343 = sbr.rel (%p341) target = $region20
      $region19: #{tpu_custom_call.1} parent=11 // pred_region
        _
      $region20: #{tpu_custom_call.1} parent=11 // pred_fallthru
        _
      // Predicated region
      $region21: #{tpu_custom_call.1} parent=11 // pred_check
        %p344 = pneg %p232
      $region22: #{tpu_custom_call.1} parent=11 // pred_check_branch
        %346 = sbr.rel (%p344) target = $region24
      $region23: #{tpu_custom_call.1} parent=11 // pred_region
        _
      $region24: #{tpu_custom_call.1} parent=11 // pred_fallthru
        _
      // Predicated region
      $region25: #{tpu_custom_call.1} parent=11 // pred_check
        %p347 = pneg %p253
      $region26: #{tpu_custom_call.1} parent=11 // pred_check_branch
        %349 = sbr.rel (%p347) target = $region28
      $region27: #{tpu_custom_call.1} parent=11 // pred_region
        _
      $region28: #{tpu_custom_call.1} parent=11 // pred_fallthru
        _
      // Predicated region
      $region29: #{tpu_custom_call.1} parent=11 // pred_check
        %p350 = pneg %p274
      $region30: #{tpu_custom_call.1} parent=11 // pred_check_branch
        %352 = sbr.rel (%p350) target = $region32
      $region31: #{tpu_custom_call.1} parent=11 // pred_region
        _
      $region32: #{tpu_custom_call.1} parent=11 // pred_fallthru
        _
      // Predicated region
      $region33: #{tpu_custom_call.1} parent=11 // pred_check
        %p353 = pneg %p295
      $region34: #{tpu_custom_call.1} parent=11 // pred_check_branch
        %355 = sbr.rel (%p353) target = $region36
      $region35: #{tpu_custom_call.1} parent=11 // pred_region
        _
      $region36: #{tpu_custom_call.1} parent=11 // pred_fallthru
        _
    $region12: #{tpu_custom_call.1} parent=5 // pred_fallthru
      _
    %p356 = scmp.lt.s32.totalorder %s19, 4
    // Predicated region
    $region37: #{tpu_custom_call.1} parent=5 // pred_check
      %p357 = pneg %p356
    $region38: #{tpu_custom_call.1} parent=5 // pred_check_branch
      %359 = sbr.rel (%p357) target = $region40
    $region39: #{tpu_custom_call.1} parent=5 // pred_region
      // Predicated region
      $region41: #{tpu_custom_call.1} parent=39 // pred_check
        %p360 = pneg %p53
      $region42: #{tpu_custom_call.1} parent=39 // pred_check_branch
        %362 = sbr.rel (%p360) target = $region44
      $region43: #{tpu_custom_call.1} parent=39 // pred_region
        %s363 = smul.u32 2, %s27
        %p364 = scmp.lt.s32.totalorder %s26, 3
        %s365 = scalar_select %p364, %s26, 3
        %p366 = scmp.lt.s32.totalorder %s363, 1
        %s367 = scalar_select %p366, %s363, 1
        %s368 = smul.addr %s365, 2
        %s369 = sadd.s32 %s367, %s368
        %s370 = smul.addr %s369, 8
        %s371 = scalar_lea.vmem %s0, %s370
        %s372 = smul.u32 2, %s27
      $region44: #{tpu_custom_call.1} parent=39 // pred_fallthru
        _
      // Predicated region
      $region45: #{tpu_custom_call.1} parent=39 // pred_check
        %p373 = pneg %p81
      $region46: #{tpu_custom_call.1} parent=39 // pred_check_branch
        %375 = sbr.rel (%p373) target = $region48
      $region47: #{tpu_custom_call.1} parent=39 // pred_region
        %s376 = smul.u32 2, %s27
        %p377 = scmp.lt.s32.totalorder %s26, 3
        %s378 = scalar_select %p377, %s26, 3
        %p379 = scmp.lt.s32.totalorder %s376, 1
        %s380 = scalar_select %p379, %s376, 1
        %s381 = smul.addr %s378, 2
        %s382 = sadd.s32 %s380, %s381
        %s383 = smul.addr %s382, 8
        %s384 = scalar_lea.vmem %s1, %s383
        %s385 = smul.u32 2, %s27
      $region48: #{tpu_custom_call.1} parent=39 // pred_fallthru
        _
      // Predicated region
      $region49: #{tpu_custom_call.1} parent=39 // pred_check
        %p386 = pneg %p109
      $region50: #{tpu_custom_call.1} parent=39 // pred_check_branch
        %388 = sbr.rel (%p386) target = $region52
      $region51: #{tpu_custom_call.1} parent=39 // pred_region
        %s389 = smul.u32 2, %s27
        %p390 = scmp.lt.s32.totalorder %s26, 3
        %s391 = scalar_select %p390, %s26, 3
        %p392 = scmp.lt.s32.totalorder %s389, 1
        %s393 = scalar_select %p392, %s389, 1
        %s394 = smul.addr %s391, 2
        %s395 = sadd.s32 %s393, %s394
        %s396 = smul.addr %s395, 8
        %s397 = scalar_lea.vmem %s2, %s396
        %s398 = smul.u32 2, %s27
      $region52: #{tpu_custom_call.1} parent=39 // pred_fallthru
        _
      // Predicated region
      $region53: #{tpu_custom_call.1} parent=39 // pred_check
        %p399 = pneg %p137
      $region54: #{tpu_custom_call.1} parent=39 // pred_check_branch
        %401 = sbr.rel (%p399) target = $region56
      $region55: #{tpu_custom_call.1} parent=39 // pred_region
        %s402 = smul.u32 2, %s27
        %p403 = scmp.lt.s32.totalorder %s26, 3
        %s404 = scalar_select %p403, %s26, 3
        %p405 = scmp.lt.s32.totalorder %s402, 1
        %s406 = scalar_select %p405, %s402, 1
        %s407 = smul.addr %s404, 2
        %s408 = sadd.s32 %s406, %s407
        %s409 = smul.addr %s408, 8
        %s410 = scalar_lea.vmem %s3, %s409
        %s411 = smul.u32 2, %s27
      $region56: #{tpu_custom_call.1} parent=39 // pred_fallthru
        _
      // Predicated region
      $region57: #{tpu_custom_call.1} parent=39 // pred_check
        %p412 = pneg %p163
      $region58: #{tpu_custom_call.1} parent=39 // pred_check_branch
        %414 = sbr.rel (%p412) target = $region60
      $region59: #{tpu_custom_call.1} parent=39 // pred_region
        %p415 = scmp.lt.s32.totalorder %s26, 3
        %s416 = scalar_select %p415, %s26, 3
        %s417 = smul.addr %s416, 8
        %s418 = scalar_lea.vmem %s4, %s417
      $region60: #{tpu_custom_call.1} parent=39 // pred_fallthru
        _
    $region40: #{tpu_custom_call.1} parent=5 // pred_fallthru
      _
    %p419 = scmp.le.s32.totalorder 1, %s19
    %p420 = scmp.lt.s32.totalorder %s19, 5
    %p421 = pnand %p419, %p420
    %p422 = pneg %p421
    // Predicated region
    $region61: #{tpu_custom_call.1} parent=5 // pred_check
      _
    $region62: #{tpu_custom_call.1} parent=5 // pred_check_branch
      %424 = sbr.rel (%p421) target = $region64
    $region63: #{tpu_custom_call.1} parent=5 // pred_region
      %s425 = ssub.s32 %s19, 1
      %s426 = smul.u32 2, %s29
      %p427 = scmp.lt.s32.totalorder %s28, 3
      %s428 = scalar_select %p427, %s28, 3
      %p429 = scmp.lt.s32.totalorder %s426, 1
      %s430 = scalar_select %p429, %s426, 1
      %s431 = smul.addr %s428, 2
      %s432 = sadd.s32 %s430, %s431
      %s433 = smul.addr %s432, 8
      %s434 = scalar_lea.vmem %s0, %s433
      %p435 = pneg %p59
      %p436 = pneg %p56
      %s437 = smul.u32 2, %s29
      %p438 = scmp.lt.s32.totalorder %s28, 3
      %s439 = scalar_select %p438, %s28, 3
      %p440 = scmp.lt.s32.totalorder %s437, 1
      %s441 = scalar_select %p440, %s437, 1
      %s442 = smul.addr %s439, 2
      %s443 = sadd.s32 %s441, %s442
      %s444 = smul.addr %s443, 8
      %s445 = scalar_lea.vmem %s1, %s444
      %p446 = pneg %p87
      %p447 = pneg %p84
      %s448 = smul.u32 2, %s29
      %p449 = scmp.lt.s32.totalorder %s28, 3
      %s450 = scalar_select %p449, %s28, 3
      %p451 = scmp.lt.s32.totalorder %s448, 1
      %s452 = scalar_select %p451, %s448, 1
      %s453 = smul.addr %s450, 2
      %s454 = sadd.s32 %s452, %s453
      %s455 = smul.addr %s454, 8
      %s456 = scalar_lea.vmem %s2, %s455
      %p457 = pneg %p115
      %p458 = pneg %p112
      %s459 = smul.u32 2, %s29
      %p460 = scmp.lt.s32.totalorder %s28, 3
      %s461 = scalar_select %p460, %s28, 3
      %p462 = scmp.lt.s32.totalorder %s459, 1
      %s463 = scalar_select %p462, %s459, 1
      %s464 = smul.addr %s461, 2
      %s465 = sadd.s32 %s463, %s464
      %s466 = smul.addr %s465, 8
      %s467 = scalar_lea.vmem %s3, %s466
      %p468 = pneg %p143
      %p469 = pneg %p140
      %p470 = scmp.lt.s32.totalorder %s28, 3
      %s471 = scalar_select %p470, %s28, 3
      %s472 = smul.addr %s471, 8
      %s473 = scalar_lea.vmem %s4, %s472
      %p474 = pneg %p169
      %p475 = pneg %p166
      %p476 = pneg %p190
      %p477 = pneg %p187
      %p478 = pneg %p211
      %p479 = pneg %p208
      %p480 = pneg %p232
      %p481 = pneg %p229
      %p482 = pneg %p253
      %p483 = pneg %p250
      %p484 = pneg %p274
      %p485 = pneg %p271
      %p486 = pneg %p295
      %p487 = pneg %p292
      %p488 = pneg %p323
      %p489 = pneg %p320
      %s490 = smul.u32 2, %s29
      %p491 = scmp.lt.s32.totalorder %s28, 3
      %s492 = scalar_select %p491, %s28, 3
      %p493 = scmp.lt.s32.totalorder %s490, 1
      %s494 = scalar_select %p493, %s490, 1
      %s495 = smul.addr %s494, 2
      %s496 = smul.addr %s492, 4
      %s497 = sadd.s32 %s495, %s496
      %s498 = smul.addr %s497, 8
      %s499 = scalar_lea.vmem %s11, %s498
      %s500 = smul.u32 2, %s29
      %p501 = scmp.lt.s32.totalorder %s28, 3
      %s502 = scalar_select %p501, %s28, 3
      %p503 = scmp.lt.s32.totalorder %s500, 1
      %s504 = scalar_select %p503, %s500, 1
      %s505 = smul.addr %s502, 2
      %s506 = sadd.s32 %s504, %s505
      %s507 = smul.addr %s506, 8
      %s508 = scalar_lea.vmem %s0, %s507
      %s509 = smul.u32 2, %s29
      %s510 = smul.u32 2, %s29
      %p511 = scmp.lt.s32.totalorder %s28, 3
      %s512 = scalar_select %p511, %s28, 3
      %p513 = scmp.lt.s32.totalorder %s510, 1
      %s514 = scalar_select %p513, %s510, 1
      %s515 = smul.addr %s512, 2
      %s516 = sadd.s32 %s514, %s515
      %s517 = smul.addr %s516, 8
      %s518 = scalar_lea.vmem %s1, %s517
      %s519 = smul.u32 2, %s29
      %s520 = smul.u32 2, %s29
      %p521 = scmp.lt.s32.totalorder %s28, 3
      %s522 = scalar_select %p521, %s28, 3
      %p523 = scmp.lt.s32.totalorder %s520, 1
      %s524 = scalar_select %p523, %s520, 1
      %s525 = smul.addr %s522, 2
      %s526 = sadd.s32 %s524, %s525
      %s527 = smul.addr %s526, 8
      %s528 = scalar_lea.vmem %s2, %s527
      %s529 = smul.u32 2, %s29
      %s530 = smul.u32 2, %s29
      %p531 = scmp.lt.s32.totalorder %s28, 3
      %s532 = scalar_select %p531, %s28, 3
      %p533 = scmp.lt.s32.totalorder %s530, 1
      %s534 = scalar_select %p533, %s530, 1
      %s535 = smul.addr %s532, 2
      %s536 = sadd.s32 %s534, %s535
      %s537 = smul.addr %s536, 8
      %s538 = scalar_lea.vmem %s3, %s537
      %s539 = smul.u32 2, %s29
      %p540 = scmp.lt.s32.totalorder %s28, 3
      %s541 = scalar_select %p540, %s28, 3
      %s542 = smul.addr %s541, 8
      %s543 = scalar_lea.vmem %s4, %s542
      %s544 = smul.u32 2, %s29
      %p545 = scmp.lt.s32.totalorder %s28, 3
      %s546 = scalar_select %p545, %s28, 3
      %p547 = scmp.lt.s32.totalorder %s544, 1
      %s548 = scalar_select %p547, %s544, 1
      %s549 = smul.addr %s548, 2
      %s550 = smul.addr %s546, 4
      %s551 = sadd.s32 %s549, %s550
      %s552 = smul.addr %s551, 8
      %s553 = scalar_lea.vmem %s11, %s552
      %s554 = smul.u32 2, %s29
      %v556 = vld [vmem:[%s508] sm:$0xff]
      %v557 = vld [vmem:[%s508 + $0x8] sm:$0xf]
      %v558 = vpack.c.bf16 %v557, %v556
      %v559 = vld [vmem:[%s5] sm:$0xf]
      %v560 = vld [vmem:[%s5 + $0x4] sm:$0xf]
      %v561 = vld [vmem:[%s5 + $0x8] sm:$0xf]
      %v562 = vld [vmem:[%s5 + $0xc] sm:$0xf]
      %v563 = vld [vmem:[%s6] sm:$0x1]
      %v565 = vperm.slane %v563, 0
      %v571 = vunpack.c.l.b16 %v559
      %v572 = vunpack.c.l.b16 %v560
      %v573 = vunpack.c.l.b16 %v561
      %v574 = vunpack.c.l.b16 %v562
      %v575 = vpack.c.b16 %v572, %v571
      %v576 = vpack.c.b16 %v574, %v573
      %vm579 = vcmask 261120
      %v581 = vsel %vm579, %v558, 0
      %583 = vmatpush.bf16.msra.mxu0 0
      %584 = vmatpush.bf16.msra.mxu0 0
      %585 = vmatpush.bf16.msra.mxu0 0
      %586 = vmatpush.bf16.msra.mxu0 0
      %587 = vmatpush.bf16.msra.mxu0 0
      %588 = vmatpush.bf16.msra.mxu0 0
      %589 = vmatpush.bf16.msra.mxu0 %v576
      %590 = vmatpush.bf16.msra.mxu0 %v575
      %591 = vmatmul.bf16.gmra.mxu0 %v581
      %v592 = vpop.f32.mrf.mxu0
      %v593 = vadd.f32 %v565, %v592
      %v594 = vpop.f32.mrf.mxu0
      %v595 = vadd.f32 %v565, %v594
      %596 = vdwg.mxu0
      %597 = vmax.xlane.f32.xlu0 %v593
      %v598 = vpop.xlane.xlu0 %597
      %vm599 = vcmask 1043456
      %v600 = vsel %vm599, %v595, -inf
      %601 = vmax.xlane.f32.xlu0 %v600
      %v602 = vpop.xlane.xlu0 %601
      %v603 = vsub.f32 %v593, %v598
      %v604 = vsub.f32 %v595, %v602
      %v605 = vmul.f32 %v603, 1.442695
      %v606 = vpow.pop %v605
      %v607 = vmul.f32 %v604, 1.442695
      %v608 = vpow.pop %v607
      %609 = vadd.xlane.f32.xlu0 %v606
      %v610 = vpop.xlane.xlu0 %609
      %v611 = vsel %vm599, %v608, 0.0
      %612 = vadd.xlane.f32.xlu0 %v611
      %v613 = vpop.xlane.xlu0 %612
      %v614 = vld [vmem:[%s7] sm:$0x1]
      %v616 = vperm.slane %v614, 0
      %v618 = vmul.f32 %v556, %v616
      %v619 = vmul.f32 %v557, %v616
      %v620 = vsel %vm579, %v618, 0.0
      %621 = vadd.xlane.f32.xlu0 %v620
      %v622 = vpop.xlane.xlu0 %621
      %vm623 = vcmask 257024
      %v624 = vsel %vm623, %v619, 0.0
      %625 = vadd.xlane.f32.xlu0 %v624
      %v626 = vpop.xlane.xlu0 %625
      %v627 = vld [vmem:[%s518] sm:$0xff]
      %v628 = vld [vmem:[%s518 + $0x8] sm:$0xf]
      %v629 = vld [vmem:[%s8] sm:$0x1]
      %v631 = vperm.slane %v629, 0
      %v633 = vmul.f32 %v627, %v631
      %v634 = vmul.f32 %v628, %v631
      %v635 = vsel %vm579, %v633, 0.0
      %636 = vadd.xlane.f32.xlu0 %v635
      %v637 = vpop.xlane.xlu0 %636
      %v638 = vsel %vm623, %v634, 0.0
      %639 = vadd.xlane.f32.xlu0 %v638
      %v640 = vpop.xlane.xlu0 %639
      %v641 = vadd.f32 %v622, %v637
      %v642 = vadd.f32 %v626, %v640
      %v643 = vld [vmem:[%s528] sm:$0xff]
      %v644 = vld [vmem:[%s528 + $0x8] sm:$0xf]
      %v645 = vld [vmem:[%s9] sm:$0x1]
      %v647 = vperm.slane %v645, 0
      %v649 = vmul.f32 %v643, %v647
      %v650 = vmul.f32 %v644, %v647
      %vm651 = vcmask 130048
      %v652 = vsel %vm651, %v649, 0.0
      %653 = vadd.xlane.f32.xlu0 %v652
      %v654 = vpop.xlane.xlu0 %653
      %vm655 = vcmask 125952
      %v656 = vsel %vm655, %v650, 0.0
      %657 = vadd.xlane.f32.xlu0 %v656
      %v658 = vpop.xlane.xlu0 %657
      %v659 = vadd.f32 %v641, %v654
      %v660 = vadd.f32 %v642, %v658
      %v661 = vld [vmem:[#allocation2] sm:$0x1]
      %v663 = vperm.slane %v661, 0
      %v665 = vadd.f32 %v659, %v663
      %v666 = vadd.f32 %v660, %v663
      %v667 = vxor.u32 %v665, 2147483648
      %v668 = vxor.u32 %v666, 2147483648
      %v669 = vmul.f32 %v667, 1.442695
      %v670 = vpow.pop %v669
      %v671 = vmul.f32 %v668, 1.442695
      %v672 = vpow.pop %v671
      %v673 = vadd.f32 %v670, 1.0
      %v674 = vadd.f32 %v672, 1.0
      %v675 = vrcp.pop %v673
      %v676 = vmul.f32 %v673, %v675
      %v677 = vsub.f32 1.0, %v676
      %v678 = vmul.f32 %v675, %v677
      %v679 = vadd.f32 %v675, %v678
      %vm680 = vweird.f32 %v673
      %vm681 = vweird.f32 %v675
      %vm682 = vmor %vm680, %vm681
      %v683 = vsel %vm682, %v675, %v679
      %v684 = vand.u32 2147483647, %v673
      %vm685 = vcmp.eq.f32.partialorder %v684, 8.507059e+37
      %v686 = vand.u32 %v673, 2147483648
      %v687 = vor.u32 1.1754944e-38, %v686
      %v688 = vsel %vm685, %v687, %v683
      %v689 = vmul.f32 1.0, %v688
      %v690 = vrcp.pop %v674
      %v691 = vmul.f32 %v674, %v690
      %v692 = vsub.f32 1.0, %v691
      %v693 = vmul.f32 %v690, %v692
      %v694 = vadd.f32 %v690, %v693
      %vm695 = vweird.f32 %v674
      %vm696 = vweird.f32 %v690
      %vm697 = vmor %vm695, %vm696
      %v698 = vsel %vm697, %v690, %v694
      %v699 = vand.u32 2147483647, %v674
      %vm700 = vcmp.eq.f32.partialorder %v699, 8.507059e+37
      %v701 = vand.u32 %v674, 2147483648
      %v702 = vor.u32 1.1754944e-38, %v701
      %v703 = vsel %vm700, %v702, %v698
      %v704 = vmul.f32 1.0, %v703
      %v705 = vsub.f32 1.0, %v689
      %v706 = vsub.f32 1.0, %v704
      %v707 = vrcp.pop %v610
      %v708 = vrcp.pop %v613
      %v709 = vmul.f32 %v705, %v707
      %v710 = vmul.f32 %v706, %v708
      %712 = vset.pattern.permute.xlu0 0
      %713 = vperm.xlu0 %712, %v709
      %v714 = vpop.permute.xlu0 %713
      %717 = vset.pattern.permute.xlu0 0
      %718 = vperm.xlu0 %717, %v710
      %v719 = vpop.permute.xlu0 %718
      %v721 = vmul.f32 %v606, %v714
      %v722 = vmul.f32 %v608, %v719
      %723 = vst [vmem:[%s553] sm:$0xff] %v721
      %724 = vst [vmem:[%s553 + $0x10] sm:$0xf] %v722
      %v725 = vld [vmem:[%s538] sm:$0xff]
      %v726 = vld [vmem:[%s538 + $0x8] sm:$0xf]
      %728 = vset.pattern.permute.xlu0 0
      %729 = vperm.xlu0 %728, %v689
      %v730 = vpop.permute.xlu0 %729
      %733 = vset.pattern.permute.xlu0 0
      %734 = vperm.xlu0 %733, %v704
      %v735 = vpop.permute.xlu0 %734
      %v737 = vmul.f32 %v725, %v730
      %v738 = vmul.f32 %v726, %v735
      %v739 = vld [vmem:[%s543] sm:$0xff]
      %vm740 = vcmask 64512
      %v742 = vsel %vm740, %v737, 0
      %v745 = vsel %vm740, %v738, 0
      %747 = vmatpush.msra.mxu0 0.0
      %748 = vmatpush.msra.mxu0 0.0
      %749 = vmatpush.msra.mxu0 0.0
      %750 = vmatpush.msra.mxu0 0.0
      %751 = vmatpush.msra.mxu0 0.0
      %752 = vmatpush.msra.mxu0 0.0
      %753 = vmatpush.msra.mxu0 0.0
      %754 = vmatpush.msra.mxu0 0.0
      %755 = vmatpush.msra.mxu0 0.0
      %756 = vmatpush.msra.mxu0 0.0
      %757 = vmatpush.msra.mxu0 0.0
      %758 = vmatpush.msra.mxu0 0.0
      %759 = vmatpush.msra.mxu0 0.0
      %760 = vmatpush.msra.mxu0 0.0
      %761 = vmatpush.msra.mxu0 0.0
      %762 = vmatpush.msra.mxu0 %v739
      %763 = vmatmul.f32.gmra.mxu0 %v742
      %v764 = vpop.f32.mrf.mxu0
      %v765 = vadd.f32 0.0, %v764
      %766 = vmatmul.f32.gmra.mxu0 %v745
      %v767 = vpop.f32.mrf.mxu0
      %v768 = vadd.f32 0.0, %v767
      %769 = vdwg.mxu0
      %770 = vst [vmem:[%s553 + $0x8] sm:$0xff] %v765
      %771 = vst [vmem:[%s553 + $0x18] sm:$0xf] %v768
      %s772 = smul.u32 2, %s29
      %p773 = scmp.lt.s32.totalorder %s28, 3
      %s774 = scalar_select %p773, %s28, 3
      %p775 = scmp.lt.s32.totalorder %s772, 1
      %s776 = scalar_select %p775, %s772, 1
      %s777 = smul.addr %s776, 2
      %s778 = smul.addr %s774, 4
      %s779 = sadd.s32 %s777, %s778
      %s780 = smul.addr %s779, 8
      %s781 = scalar_lea.vmem %s11, %s780
      // Predicated region
      $region65: #{tpu_custom_call.1} parent=63 // pred_check
        %p782 = pneg %p320
      $region66: #{tpu_custom_call.1} parent=63 // pred_check_branch
        %784 = sbr.rel (%p782) target = $region68
      $region67: #{tpu_custom_call.1} parent=63 // pred_region
        %s785 = smul.u32 2, %s29
      $region68: #{tpu_custom_call.1} parent=63 // pred_fallthru
        _
    $region64: #{tpu_custom_call.1} parent=5 // pred_fallthru
      _
    %p786 = scmp.le.s32.totalorder 2, %s19
    // Predicated region
    $region69: #{tpu_custom_call.1} parent=5 // pred_check
      %p787 = pneg %p786
    $region70: #{tpu_custom_call.1} parent=5 // pred_check_branch
      %789 = sbr.rel (%p787) target = $region72
    $region71: #{tpu_custom_call.1} parent=5 // pred_region
      %s790 = ssub.s32 %s19, 2
      // Predicated region
      $region73: #{tpu_custom_call.1} parent=71 // pred_check
        %p791 = pneg %p326
      $region74: #{tpu_custom_call.1} parent=71 // pred_check_branch
        %793 = sbr.rel (%p791) target = $region76
      $region75: #{tpu_custom_call.1} parent=71 // pred_region
        %s794 = smul.u32 2, %s31
        %p795 = scmp.lt.s32.totalorder %s30, 3
        %s796 = scalar_select %p795, %s30, 3
        %p797 = scmp.lt.s32.totalorder %s794, 1
        %s798 = scalar_select %p797, %s794, 1
        %s799 = smul.addr %s798, 2
        %s800 = smul.addr %s796, 4
        %s801 = sadd.s32 %s799, %s800
        %s802 = smul.addr %s801, 8
        %s803 = scalar_lea.vmem %s11, %s802
      $region76: #{tpu_custom_call.1} parent=71 // pred_fallthru
        _
    $region72: #{tpu_custom_call.1} parent=5 // pred_fallthru
      _
  $region6: #{tpu_custom_call.1} parent=0 // loop_footer
    %s23 = sadd.s32 1, %s19
  $region7: #{tpu_custom_call.1} parent=0 // loop_footer_branch
    %18 = sbr.rel target = $region3
  $region8: #{tpu_custom_call.1} parent=0 // loop_exit
    _

</llo_original>
